<compile_context>
chip_gen: v7x
topology: tpu7x:2x2x1
jax: 0.10.0
libtpu: 0.0.40
codegen_flags: <defaults>
</compile_context>

<pallas_src>
import functools

import jax
import jax.numpy as jnp
from jax import lax
from jax.experimental import pallas as pl
from jax.experimental.pallas import tpu as pltpu


def _round_up(v, m):
    return ((v + m - 1) // m) * m


def _patch_merge_kernel(x_ref, we_ref, wo_ref, csum_ref, b_ref, o_ref, *,
                        w2_count, c4, eps):
    # x_ref : (tm, 2*W2, 2C) raw (padded) activations.
    #         [:, :W2, :]  = [x0 | x2] pairs (even source rows)
    #         [:, W2:, :]  = [x1 | x3] pairs (odd  source rows)
    # we_ref: (2C, Co) bf16 folded weight rows for [x0 | x2]
    # wo_ref: (2C, Co) bf16 folded weight rows for [x1 | x3]
    # csum  : (1, Co)  f32  column sums of the full folded (4C, Co) weight
    # b_ref : (1, Co)  f32  beta @ W.T
    # o_ref : (tm, W2, Co)
    inv_c4 = 1.0 / c4
    we = we_ref[...]
    wo = wo_ref[...]
    csum = csum_ref[...]
    bias = b_ref[...]

    # Static (trace-time) loop over the W2 pixel-pair positions; each iteration
    # is a clean 2D slice -> 2D matmuls on the MXU.
    for w2 in range(w2_count):
        xe = x_ref[:, w2, :].astype(jnp.float32)              # (tm, 2C)
        xo = x_ref[:, w2_count + w2, :].astype(jnp.float32)   # (tm, 2C)

        # LayerNorm statistics over the full 4C group (one pass, f32).
        s1 = jnp.sum(xe, axis=-1, keepdims=True) + jnp.sum(xo, axis=-1,
                                                           keepdims=True)
        s2 = (jnp.sum(xe * xe, axis=-1, keepdims=True)
              + jnp.sum(xo * xo, axis=-1, keepdims=True))
        mean = s1 * inv_c4
        var = jnp.maximum(s2 * inv_c4 - mean * mean, 0.0)
        inv = lax.rsqrt(var + eps)

        # Raw (uncentered) bf16 activations straight to the MXU; centering and
        # normalization are applied after the matmul via the column sums.
        acc = jnp.dot(xe.astype(we.dtype), we,
                      preferred_element_type=jnp.float32)
        acc = acc + jnp.dot(xo.astype(wo.dtype), wo,
                            preferred_element_type=jnp.float32)
        y = inv * (acc - mean * csum) + bias
        # NOTE: rows past the valid M in the last partial block compute garbage
        # stats here but are masked out on writeback by Pallas.
        o_ref[:, w2, :] = y.astype(o_ref.dtype)


def patch_merging_forward(x, gamma, beta, weight, *, eps=1e-5,
                          target_rows_per_step=2048,
                          mxu_dtype=jnp.bfloat16):
    """x: (B, D, H, W, C); gamma/beta: (4C,); weight: (2C, 4C) like nn.Linear."""
    B, D, H, W, C = x.shape

    # Pad H, W to even (matches F.pad(x, (0,0, 0, W%2, 0, H%2))); only copies
    # when a spatial dim is odd.
    if (H % 2 == 1) or (W % 2 == 1):
        x = jnp.pad(x, ((0, 0), (0, 0), (0, H % 2), (0, W % 2), (0, 0)))
    Hp, Wp = x.shape[2], x.shape[3]
    H2, W2 = Hp // 2, Wp // 2
    M = B * D * H2
    C2 = 2 * C      # channels of one W-adjacent pixel pair
    C4 = 4 * C      # LayerNorm width
    Co = 2 * C      # output features of the reduction

    # Pure (copy-free) reshape: rows are (b, d, h2); the middle axis packs the
    # two H-parities (even first, then odd), each holding W2 pixel pairs of 2C:
    #   xr[m, 0*W2 + w2, :] = concat(x[.., 2h2,   2w2, :], x[.., 2h2,   2w2+1, :])
    #   xr[m, 1*W2 + w2, :] = concat(x[.., 2h2+1, 2w2, :], x[.., 2h2+1, 2w2+1, :])
    xr = x.reshape(M, 2 * W2, C2)

    # Fold LN affine into the reduction weight (f32 math), split its 4C rows
    # into the two parity halves matching xr's packing, precompute column sums
    # (for post-matmul centering) and the folded bias.
    w_t = weight.T.astype(jnp.float32)                     # (4C, Co)
    w_fold = gamma.astype(jnp.float32)[:, None] * w_t      # (4C, Co)
    w_even = jnp.concatenate([w_fold[0:C], w_fold[2 * C:3 * C]], axis=0)
    w_odd = jnp.concatenate([w_fold[C:2 * C], w_fold[3 * C:4 * C]], axis=0)
    col_sum = jnp.sum(w_fold, axis=0).reshape(1, Co)                  # f32
    b_fold = (beta.astype(jnp.float32) @ w_t).reshape(1, Co)          # f32
    w_even = w_even.astype(mxu_dtype)
    w_odd = w_odd.astype(mxu_dtype)

    # --- Tile selection: large row tiles (amortize ~0.35us/step), VMEM-aware. ---
    x_bytes = x.dtype.itemsize
    o_bytes = x.dtype.itemsize
    # Per-m VMEM footprint with (8,128) tiling padding of the last two dims.
    in_per_m = _round_up(2 * W2, 8) * _round_up(C2, 128) * x_bytes
    out_per_m = _round_up(W2, 8) * _round_up(Co, 128) * o_bytes
    budget = 36 * 1024 * 1024          # double-buffered input+output budget
    tm = max(1, target_rows_per_step // max(W2, 1))
    tm = min(tm, max(1, budget // (2 * (in_per_m + out_per_m))))
    tm = min(tm, M)
    grid = (pl.cdiv(M, tm),)

    pipeline_bytes = 2 * tm * (in_per_m + out_per_m)
    vmem_limit = int(min(max(pipeline_bytes + 8 * 1024 * 1024,
                             32 * 1024 * 1024),
                         64 * 1024 * 1024))   # stays within 64 MiB/TC on v7x

    kernel = functools.partial(_patch_merge_kernel, w2_count=W2,
                               c4=float(C4), eps=float(eps))

    out3d = pl.pallas_call(
        kernel,
        out_shape=jax.ShapeDtypeStruct((M, W2, Co), x.dtype),
        grid_spec=pltpu.PrefetchScalarGridSpec(
            num_scalar_prefetch=0,
            grid=grid,
            in_specs=[
                pl.BlockSpec((tm, 2 * W2, C2), lambda i: (i, 0, 0)),  # activations
                pl.BlockSpec((C2, Co), lambda i: (0, 0)),   # W_even (resident)
                pl.BlockSpec((C2, Co), lambda i: (0, 0)),   # W_odd  (resident)
                pl.BlockSpec((1, Co), lambda i: (0, 0)),    # column sums
                pl.BlockSpec((1, Co), lambda i: (0, 0)),    # folded bias
            ],
            out_specs=pl.BlockSpec((tm, W2, Co), lambda i: (i, 0, 0)),
        ),
        compiler_params=pltpu.CompilerParams(
            dimension_semantics=("parallel",),
            vmem_limit_bytes=vmem_limit,
        ),
    )(xr, w_even, w_odd, col_sum, b_fold)

    return out3d.reshape(B, D, H2, W2, Co)


def _reference_forward(x, gamma, beta, weight, eps=1e-5):
    """Pure-JAX (f32) reference mirroring the PyTorch module."""
    B, D, H, W, C = x.shape
    if (H % 2 == 1) or (W % 2 == 1):
        x = jnp.pad(x, ((0, 0), (0, 0), (0, H % 2), (0, W % 2), (0, 0)))
    x0 = x[:, :, 0::2, 0::2, :]
    x1 = x[:, :, 1::2, 0::2, :]
    x2 = x[:, :, 0::2, 1::2, :]
    x3 = x[:, :, 1::2, 1::2, :]
    xc = jnp.concatenate([x0, x1, x2, x3], axis=-1).astype(jnp.float32)
    mean = jnp.mean(xc, axis=-1, keepdims=True)
    var = jnp.mean((xc - mean) ** 2, axis=-1, keepdims=True)
    xn = (xc - mean) / jnp.sqrt(var + eps) * gamma + beta
    return jnp.einsum("...i,oi->...o", xn, weight)


if __name__ == "__main__":
    key = jax.random.PRNGKey(0)
    k1, k2, k3, k4 = jax.random.split(key, 4)

    # Small shapes consistent with the module: dim = C = 32.
    B, D, H, W, C = 2, 2, 5, 4, 32   # odd H exercises the padding branch
    dim = C

    x = jax.random.normal(k1, (B, D, H, W, C), dtype=jnp.float32)

    # Deterministic synthetic parameters (not a checkpoint load).
    weight = jax.random.normal(k2, (2 * dim, 4 * dim), dtype=jnp.float32) * 0.05
    gamma = 1.0 + 0.01 * jax.random.normal(k3, (4 * dim,), dtype=jnp.float32)
    beta = 0.01 * jax.random.normal(k4, (4 * dim,), dtype=jnp.float32)

    out = patch_merging_forward(x, gamma, beta, weight)
    out = jax.block_until_ready(out)

    ref = _reference_forward(x, gamma, beta, weight)
    assert out.shape == (B, D, (H + 1) // 2, (W + 1) // 2, 2 * dim), out.shape
    # bf16 MXU operands -> slightly looser tolerance vs the f32 reference.
    assert jnp.allclose(out, ref, atol=2e-2, rtol=2e-2), float(
        jnp.max(jnp.abs(out - ref)))

    print("KERNEL_OK")
</pallas_src>

<mosaic_0001>
module attributes {stable_mosaic.version = 11 : i64} {
  func.func @_patch_merge_kernel(%arg0: i32, %arg1: memref<12x4x64xf32, #tpu.memory_space<vmem>>, %arg2: memref<64x64xbf16, #tpu.memory_space<vmem>>, %arg3: memref<64x64xbf16, #tpu.memory_space<vmem>>, %arg4: memref<1x64xf32, #tpu.memory_space<vmem>>, %arg5: memref<1x64xf32, #tpu.memory_space<vmem>>, %arg6: memref<12x2x64xf32, #tpu.memory_space<vmem>>) attributes {dimension_semantics = [#tpu.dimension_semantics<parallel>], iteration_bounds = array<i64: 1>, scalar_prefetch = 0 : i64, scratch_operands = 0 : i64, tpu.core_type = #tpu.core_type<tc>, window_params = [{transform_indices = @transform_0, window_bounds = array<i64: 12, 4, 64>}, {pipeline_mode = #tpu.pipeline_mode<synchronous>, transform_indices = @transform_1, window_bounds = array<i64: 64, 64>}, {pipeline_mode = #tpu.pipeline_mode<synchronous>, transform_indices = @transform_2, window_bounds = array<i64: 64, 64>}, {pipeline_mode = #tpu.pipeline_mode<synchronous>, transform_indices = @transform_3, window_bounds = array<i64: 1, 64>}, {pipeline_mode = #tpu.pipeline_mode<synchronous>, transform_indices = @transform_4, window_bounds = array<i64: 1, 64>}, {transform_indices = @transform_5, window_bounds = array<i64: 12, 2, 64>}]} {
    %c0 = arith.constant 0 : index
    %c0_0 = arith.constant 0 : index
    %0 = vector.load %arg2[%c0, %c0_0] : memref<64x64xbf16, #tpu.memory_space<vmem>>, vector<64x64xbf16>
    %c0_1 = arith.constant 0 : index
    %c0_2 = arith.constant 0 : index
    %1 = vector.load %arg3[%c0_1, %c0_2] : memref<64x64xbf16, #tpu.memory_space<vmem>>, vector<64x64xbf16>
    %c0_3 = arith.constant 0 : index
    %c0_4 = arith.constant 0 : index
    %2 = vector.load %arg4[%c0_3, %c0_4] : memref<1x64xf32, #tpu.memory_space<vmem>>, vector<1x64xf32>
    %c0_5 = arith.constant 0 : index
    %c0_6 = arith.constant 0 : index
    %3 = vector.load %arg5[%c0_5, %c0_6] : memref<1x64xf32, #tpu.memory_space<vmem>>, vector<1x64xf32>
    %c0_7 = arith.constant 0 : index
    %c0_8 = arith.constant 0 : index
    %c0_9 = arith.constant 0 : index
    %4 = vector.load %arg1[%c0_7, %c0_8, %c0_9] : memref<12x4x64xf32, #tpu.memory_space<vmem>>, vector<12x1x64xf32>
    %5 = vector.shape_cast %4 : vector<12x1x64xf32> to vector<12x64xf32>
    %c0_10 = arith.constant 0 : index
    %c2 = arith.constant 2 : index
    %c0_11 = arith.constant 0 : index
    %6 = vector.load %arg1[%c0_10, %c2, %c0_11] : memref<12x4x64xf32, #tpu.memory_space<vmem>>, vector<12x1x64xf32>
    %7 = vector.shape_cast %6 : vector<12x1x64xf32> to vector<12x64xf32>
    %cst = arith.constant dense<0.000000e+00> : vector<12xf32>
    %8 = vector.multi_reduction <add>, %5, %cst [1] : vector<12x64xf32> to vector<12xf32>
    %9 = vector.shape_cast %8 : vector<12xf32> to vector<12x1xf32>
    %cst_12 = arith.constant dense<0.000000e+00> : vector<12xf32>
    %10 = vector.multi_reduction <add>, %7, %cst_12 [1] : vector<12x64xf32> to vector<12xf32>
    %11 = vector.shape_cast %10 : vector<12xf32> to vector<12x1xf32>
    %12 = arith.addf %9, %11 : vector<12x1xf32>
    %13 = arith.mulf %5, %5 : vector<12x64xf32>
    %cst_13 = arith.constant dense<0.000000e+00> : vector<12xf32>
    %14 = vector.multi_reduction <add>, %13, %cst_13 [1] : vector<12x64xf32> to vector<12xf32>
    %15 = vector.shape_cast %14 : vector<12xf32> to vector<12x1xf32>
    %16 = arith.mulf %7, %7 : vector<12x64xf32>
    %cst_14 = arith.constant dense<0.000000e+00> : vector<12xf32>
    %17 = vector.multi_reduction <add>, %16, %cst_14 [1] : vector<12x64xf32> to vector<12xf32>
    %18 = vector.shape_cast %17 : vector<12xf32> to vector<12x1xf32>
    %19 = arith.addf %15, %18 : vector<12x1xf32>
    %cst_15 = arith.constant 7.812500e-03 : f32
    %20 = vector.broadcast %cst_15 : f32 to vector<12x1xf32>
    %21 = arith.mulf %12, %20 : vector<12x1xf32>
    %cst_16 = arith.constant 7.812500e-03 : f32
    %22 = vector.broadcast %cst_16 : f32 to vector<12x1xf32>
    %23 = arith.mulf %19, %22 : vector<12x1xf32>
    %24 = arith.mulf %21, %21 : vector<12x1xf32>
    %25 = arith.subf %23, %24 : vector<12x1xf32>
    %cst_17 = arith.constant 0.000000e+00 : f32
    %26 = vector.broadcast %cst_17 : f32 to vector<12x1xf32>
    %27 = arith.maximumf %25, %26 : vector<12x1xf32>
    %cst_18 = arith.constant 9.99999974E-6 : f32
    %28 = vector.broadcast %cst_18 : f32 to vector<12x1xf32>
    %29 = arith.addf %27, %28 : vector<12x1xf32>
    %30 = math.rsqrt %29 : vector<12x1xf32>
    %31 = arith.truncf %5 : vector<12x64xf32> to vector<12x64xbf16>
    %cst_19 = arith.constant dense<0.000000e+00> : vector<12x64xf32>
    %32 = tpu.matmul %31, %0, %cst_19 {dimension_numbers = #tpu.dot_dimension_numbers<[1], [0], [0], [1], [0, 0, 1, 1], [], []>} : vector<12x64xbf16>, vector<64x64xbf16>, vector<12x64xf32> -> vector<12x64xf32>
    %33 = arith.truncf %7 : vector<12x64xf32> to vector<12x64xbf16>
    %cst_20 = arith.constant dense<0.000000e+00> : vector<12x64xf32>
    %34 = tpu.matmul %33, %1, %cst_20 {dimension_numbers = #tpu.dot_dimension_numbers<[1], [0], [0], [1], [0, 0, 1, 1], [], []>} : vector<12x64xbf16>, vector<64x64xbf16>, vector<12x64xf32> -> vector<12x64xf32>
    %35 = arith.addf %32, %34 : vector<12x64xf32>
    %36 = vector.broadcast %21 : vector<12x1xf32> to vector<12x64xf32>
    %37 = vector.broadcast %2 : vector<1x64xf32> to vector<12x64xf32>
    %38 = arith.mulf %36, %37 : vector<12x64xf32>
    %39 = arith.subf %35, %38 : vector<12x64xf32>
    %40 = vector.broadcast %30 : vector<12x1xf32> to vector<12x64xf32>
    %41 = arith.mulf %40, %39 : vector<12x64xf32>
    %42 = vector.broadcast %3 : vector<1x64xf32> to vector<12x64xf32>
    %43 = arith.addf %41, %42 : vector<12x64xf32>
    %c0_21 = arith.constant 0 : index
    %c0_22 = arith.constant 0 : index
    %c0_23 = arith.constant 0 : index
    %44 = vector.load %arg6[%c0_21, %c0_22, %c0_23] : memref<12x2x64xf32, #tpu.memory_space<vmem>>, vector<12x1x64xf32>
    %45 = vector.shape_cast %44 : vector<12x1x64xf32> to vector<12x64xf32>
    %46 = vector.shape_cast %43 : vector<12x64xf32> to vector<12x1x64xf32>
    tpu.vector_store %arg6[%c0_21, %c0_22, %c0_23], %46 {strides = array<i32>} : memref<12x2x64xf32, #tpu.memory_space<vmem>>, vector<12x1x64xf32>,
    %c0_24 = arith.constant 0 : index
    %c1 = arith.constant 1 : index
    %c0_25 = arith.constant 0 : index
    %47 = vector.load %arg1[%c0_24, %c1, %c0_25] : memref<12x4x64xf32, #tpu.memory_space<vmem>>, vector<12x1x64xf32>
    %48 = vector.shape_cast %47 : vector<12x1x64xf32> to vector<12x64xf32>
    %c0_26 = arith.constant 0 : index
    %c3 = arith.constant 3 : index
    %c0_27 = arith.constant 0 : index
    %49 = vector.load %arg1[%c0_26, %c3, %c0_27] : memref<12x4x64xf32, #tpu.memory_space<vmem>>, vector<12x1x64xf32>
    %50 = vector.shape_cast %49 : vector<12x1x64xf32> to vector<12x64xf32>
    %cst_28 = arith.constant dense<0.000000e+00> : vector<12xf32>
    %51 = vector.multi_reduction <add>, %48, %cst_28 [1] : vector<12x64xf32> to vector<12xf32>
    %52 = vector.shape_cast %51 : vector<12xf32> to vector<12x1xf32>
    %cst_29 = arith.constant dense<0.000000e+00> : vector<12xf32>
    %53 = vector.multi_reduction <add>, %50, %cst_29 [1] : vector<12x64xf32> to vector<12xf32>
    %54 = vector.shape_cast %53 : vector<12xf32> to vector<12x1xf32>
    %55 = arith.addf %52, %54 : vector<12x1xf32>
    %56 = arith.mulf %48, %48 : vector<12x64xf32>
    %cst_30 = arith.constant dense<0.000000e+00> : vector<12xf32>
    %57 = vector.multi_reduction <add>, %56, %cst_30 [1] : vector<12x64xf32> to vector<12xf32>
    %58 = vector.shape_cast %57 : vector<12xf32> to vector<12x1xf32>
    %59 = arith.mulf %50, %50 : vector<12x64xf32>
    %cst_31 = arith.constant dense<0.000000e+00> : vector<12xf32>
    %60 = vector.multi_reduction <add>, %59, %cst_31 [1] : vector<12x64xf32> to vector<12xf32>
    %61 = vector.shape_cast %60 : vector<12xf32> to vector<12x1xf32>
    %62 = arith.addf %58, %61 : vector<12x1xf32>
    %cst_32 = arith.constant 7.812500e-03 : f32
    %63 = vector.broadcast %cst_32 : f32 to vector<12x1xf32>
    %64 = arith.mulf %55, %63 : vector<12x1xf32>
    %cst_33 = arith.constant 7.812500e-03 : f32
    %65 = vector.broadcast %cst_33 : f32 to vector<12x1xf32>
    %66 = arith.mulf %62, %65 : vector<12x1xf32>
    %67 = arith.mulf %64, %64 : vector<12x1xf32>
    %68 = arith.subf %66, %67 : vector<12x1xf32>
    %cst_34 = arith.constant 0.000000e+00 : f32
    %69 = vector.broadcast %cst_34 : f32 to vector<12x1xf32>
    %70 = arith.maximumf %68, %69 : vector<12x1xf32>
    %cst_35 = arith.constant 9.99999974E-6 : f32
    %71 = vector.broadcast %cst_35 : f32 to vector<12x1xf32>
    %72 = arith.addf %70, %71 : vector<12x1xf32>
    %73 = math.rsqrt %72 : vector<12x1xf32>
    %74 = arith.truncf %48 : vector<12x64xf32> to vector<12x64xbf16>
    %cst_36 = arith.constant dense<0.000000e+00> : vector<12x64xf32>
    %75 = tpu.matmul %74, %0, %cst_36 {dimension_numbers = #tpu.dot_dimension_numbers<[1], [0], [0], [1], [0, 0, 1, 1], [], []>} : vector<12x64xbf16>, vector<64x64xbf16>, vector<12x64xf32> -> vector<12x64xf32>
    %76 = arith.truncf %50 : vector<12x64xf32> to vector<12x64xbf16>
    %cst_37 = arith.constant dense<0.000000e+00> : vector<12x64xf32>
    %77 = tpu.matmul %76, %1, %cst_37 {dimension_numbers = #tpu.dot_dimension_numbers<[1], [0], [0], [1], [0, 0, 1, 1], [], []>} : vector<12x64xbf16>, vector<64x64xbf16>, vector<12x64xf32> -> vector<12x64xf32>
    %78 = arith.addf %75, %77 : vector<12x64xf32>
    %79 = vector.broadcast %64 : vector<12x1xf32> to vector<12x64xf32>
    %80 = vector.broadcast %2 : vector<1x64xf32> to vector<12x64xf32>
    %81 = arith.mulf %79, %80 : vector<12x64xf32>
    %82 = arith.subf %78, %81 : vector<12x64xf32>
    %83 = vector.broadcast %73 : vector<12x1xf32> to vector<12x64xf32>
    %84 = arith.mulf %83, %82 : vector<12x64xf32>
    %85 = vector.broadcast %3 : vector<1x64xf32> to vector<12x64xf32>
    %86 = arith.addf %84, %85 : vector<12x64xf32>
    %c0_38 = arith.constant 0 : index
    %c1_39 = arith.constant 1 : index
    %c0_40 = arith.constant 0 : index
    %87 = vector.load %arg6[%c0_38, %c1_39, %c0_40] : memref<12x2x64xf32, #tpu.memory_space<vmem>>, vector<12x1x64xf32>
    %88 = vector.shape_cast %87 : vector<12x1x64xf32> to vector<12x64xf32>
    %89 = vector.shape_cast %86 : vector<12x64xf32> to vector<12x1x64xf32>
    tpu.vector_store %arg6[%c0_38, %c1_39, %c0_40], %89 {strides = array<i32>} : memref<12x2x64xf32, #tpu.memory_space<vmem>>, vector<12x1x64xf32>,
    return
  }
  func.func @transform_0(%arg0: i32) -> (i32, i32, i32) {
    %c0_i32 = arith.constant 0 : i32
    %c0_i32_0 = arith.constant 0 : i32
    %c0_i32_1 = arith.constant 0 : i32
    return %arg0, %c0_i32, %c0_i32_0 : i32, i32, i32
  }
  func.func @transform_1(%arg0: i32) -> (i32, i32) {
    %c0_i32 = arith.constant 0 : i32
    %c0_i32_0 = arith.constant 0 : i32
    %c0_i32_1 = arith.constant 0 : i32
    return %c0_i32, %c0_i32_0 : i32, i32
  }
  func.func @transform_2(%arg0: i32) -> (i32, i32) {
    %c0_i32 = arith.constant 0 : i32
    %c0_i32_0 = arith.constant 0 : i32
    %c0_i32_1 = arith.constant 0 : i32
    return %c0_i32, %c0_i32_0 : i32, i32
  }
  func.func @transform_3(%arg0: i32) -> (i32, i32) {
    %c0_i32 = arith.constant 0 : i32
    %c0_i32_0 = arith.constant 0 : i32
    %c0_i32_1 = arith.constant 0 : i32
    return %c0_i32, %c0_i32_0 : i32, i32
  }
  func.func @transform_4(%arg0: i32) -> (i32, i32) {
    %c0_i32 = arith.constant 0 : i32
    %c0_i32_0 = arith.constant 0 : i32
    %c0_i32_1 = arith.constant 0 : i32
    return %c0_i32, %c0_i32_0 : i32, i32
  }
  func.func @transform_5(%arg0: i32) -> (i32, i32, i32) {
    %c0_i32 = arith.constant 0 : i32
    %c0_i32_0 = arith.constant 0 : i32
    %c0_i32_1 = arith.constant 0 : i32
    return %arg0, %c0_i32, %c0_i32_0 : i32, i32, i32
  }
}

</mosaic_0001>

<llo_original>
// kernel: tpu_custom_call.1
$region0: #{tpu_custom_call.1}
  #allocation0 [shape = 'u32[]', space=smem, size = 0x4, offset = 0x4, fixed_abs, tag = 'smem constant byte address 0x4 - core index']
  #allocation1 [shape = 'u32[144,128]{1,0:T(1,128)}', space=vmem, size = 0x12000, scoped, tag = 'internal scratch']
  %s0 = inlined_call_operand.hbm [shape: f32[12,4,64], index: 0, kind: input, shape index: {}]
  %s1 = inlined_call_operand.hbm [shape: bf16[64,64], index: 1, kind: input, shape index: {}]
  %s2 = inlined_call_operand.hbm [shape: bf16[64,64], index: 2, kind: input, shape index: {}]
  %s3 = inlined_call_operand.vmem [shape: f32[1,64], index: 3, kind: input, shape index: {}]
  %s4 = inlined_call_operand.vmem [shape: f32[1,64], index: 4, kind: input, shape index: {}]
  %s5 = inlined_call_operand.hbm [shape: f32[12,2,64], index: 5, kind: output, shape index: {}]
  %s6 = sld [smem:[#allocation0]]
  $region42: #{tpu_custom_call.1} parent=0
    _
  %s8 = ssub.s32 1, %s6
  %s9 = scalar_select 0, %s8, %s6
  $region1: #{tpu_custom_call.1} parent=0
    #allocation2 [shape = 'u8[24576]{0}', space=vmem, size = 0x6000, scoped, tag = 'input window, operand 0, single buffered']
    #allocation3 [shape = 's32[1]{0}', space=sflag, size = 0x4, scoped, tag = 'scoped memory for tpu_custom_call.1']
    #allocation4 [shape = 's32[1]{0}', space=sflag, size = 0x4, scoped, tag = 'scoped memory for tpu_custom_call.1']
    #allocation5 [shape = 'u8[16384]{0}', space=vmem, size = 0x4000, scoped, tag = 'input window, operand 1, single buffered']
    #allocation6 [shape = 's32[1]{0}', space=sflag, size = 0x4, scoped, tag = 'scoped memory for tpu_custom_call.1']
    #allocation7 [shape = 'u8[16384]{0}', space=vmem, size = 0x4000, scoped, tag = 'input window, operand 2, single buffered']
    #allocation8 [shape = 'u8[12288]{0}', space=vmem, size = 0x3000, scoped, tag = 'output window, operand 0, single buffered']
    %10 = vsyncpa [#allocation3], 0
    %11 = vsyncpa [#allocation6], 0
    %12 = vsyncpa [#allocation4], 0
    // Predicated region
    $region2: #{tpu_custom_call.1} parent=1 // pred_check
      _
    $region3: #{tpu_custom_call.1} parent=1 // pred_check_branch
      %14 = sbr.rel (0) target = $region5
    $region4: #{tpu_custom_call.1} parent=1 // pred_region
      %s16 = ssub.s32 768, 768
      %17 = vsyncadd [#allocation3], %s16
      %s18 = sshll.u32 [#allocation2], 4
      %s19 = int_to_ptr.vmem [resolvable:$true] %s18
      %24 = dma.hbm_to_vmem [thread:$0]  %s0, 768, %s19, [#allocation3], 64, 64, 4
    $region5: #{tpu_custom_call.1} parent=1 // pred_fallthru
      _
    // Predicated region
    $region6: #{tpu_custom_call.1} parent=1 // pred_check
      _
    $region7: #{tpu_custom_call.1} parent=1 // pred_check_branch
      %26 = sbr.rel (0) target = $region9
    $region8: #{tpu_custom_call.1} parent=1 // pred_region
      %s28 = ssub.s32 512, 512
      %29 = vsyncadd [#allocation6], %s28
      %s30 = sshll.u32 [#allocation5], 4
      %s31 = int_to_ptr.vmem [resolvable:$true] %s30
      %36 = dma.hbm_to_vmem [thread:$0]  %s1, 512, %s31, [#allocation6], 64, 64, 4
    $region9: #{tpu_custom_call.1} parent=1 // pred_fallthru
      _
    // Predicated region
    $region10: #{tpu_custom_call.1} parent=1 // pred_check
      _
    $region11: #{tpu_custom_call.1} parent=1 // pred_check_branch
      %38 = sbr.rel (0) target = $region13
    $region12: #{tpu_custom_call.1} parent=1 // pred_region
      %s40 = ssub.s32 512, 512
      %41 = vsyncadd [#allocation6], %s40
      %s42 = sshll.u32 [#allocation7], 4
      %s43 = int_to_ptr.vmem [resolvable:$true] %s42
      %48 = dma.hbm_to_vmem [thread:$0]  %s2, 512, %s43, [#allocation6], 64, 64, 4
    $region13: #{tpu_custom_call.1} parent=1 // pred_fallthru
      _
    // Predicated region
    $region14: #{tpu_custom_call.1} parent=1 // pred_check
      _
    $region15: #{tpu_custom_call.1} parent=1 // pred_check_branch
      %50 = sbr.rel (0) target = $region17
    $region16: #{tpu_custom_call.1} parent=1 // pred_region
      _
    $region17: #{tpu_custom_call.1} parent=1 // pred_fallthru
      _
    // Predicated region
    $region18: #{tpu_custom_call.1} parent=1 // pred_check
      _
    $region19: #{tpu_custom_call.1} parent=1 // pred_check_branch
      %52 = sbr.rel (0) target = $region21
    $region20: #{tpu_custom_call.1} parent=1 // pred_region
      _
    $region21: #{tpu_custom_call.1} parent=1 // pred_fallthru
      _
    // Predicated region
    $region22: #{tpu_custom_call.1} parent=1 // pred_check
      _
    $region23: #{tpu_custom_call.1} parent=1 // pred_check_branch
      %54 = sbr.rel (0) target = $region25
    $region24: #{tpu_custom_call.1} parent=1 // pred_region
      %55 = dma.done [#allocation3], 768
    $region25: #{tpu_custom_call.1} parent=1 // pred_fallthru
      _
    // Predicated region
    $region26: #{tpu_custom_call.1} parent=1 // pred_check
      _
    $region27: #{tpu_custom_call.1} parent=1 // pred_check_branch
      %57 = sbr.rel (0) target = $region29
    $region28: #{tpu_custom_call.1} parent=1 // pred_region
      %58 = dma.done [#allocation6], 512
    $region29: #{tpu_custom_call.1} parent=1 // pred_fallthru
      _
    // Predicated region
    $region30: #{tpu_custom_call.1} parent=1 // pred_check
      _
    $region31: #{tpu_custom_call.1} parent=1 // pred_check_branch
      %60 = sbr.rel (0) target = $region33
    $region32: #{tpu_custom_call.1} parent=1 // pred_region
      %61 = dma.done [#allocation6], 512
    $region33: #{tpu_custom_call.1} parent=1 // pred_fallthru
      _
    %v63 = vld [vmem:[#allocation5] sm:$0xf]
    %v64 = vld [vmem:[#allocation5 + $0x4] sm:$0xf]
    %v65 = vld [vmem:[#allocation5 + $0x8] sm:$0xf]
    %v66 = vld [vmem:[#allocation5 + $0xc] sm:$0xf]
    %v67 = vld [vmem:[#allocation5 + $0x10] sm:$0xf]
    %v68 = vld [vmem:[#allocation5 + $0x14] sm:$0xf]
    %v69 = vld [vmem:[#allocation5 + $0x18] sm:$0xf]
    %v70 = vld [vmem:[#allocation5 + $0x1c] sm:$0xf]
    %v71 = vld [vmem:[#allocation7] sm:$0xf]
    %v72 = vld [vmem:[#allocation7 + $0x4] sm:$0xf]
    %v73 = vld [vmem:[#allocation7 + $0x8] sm:$0xf]
    %v74 = vld [vmem:[#allocation7 + $0xc] sm:$0xf]
    %v75 = vld [vmem:[#allocation7 + $0x10] sm:$0xf]
    %v76 = vld [vmem:[#allocation7 + $0x14] sm:$0xf]
    %v77 = vld [vmem:[#allocation7 + $0x18] sm:$0xf]
    %v78 = vld [vmem:[#allocation7 + $0x1c] sm:$0xf]
    %v79 = vld [vmem:[%s3] sm:$0x1]
    %v80 = vld [vmem:[%s4] sm:$0x1]
    %v81 = vld [vmem:[#allocation2] sm:$0x1]
    %v82 = vld [vmem:[#allocation2 + $0x4] sm:$0x1]
    %v83 = vld [vmem:[#allocation2 + $0x8] sm:$0x1]
    %v84 = vld [vmem:[#allocation2 + $0xc] sm:$0x1]
    %v85 = vld [vmem:[#allocation2 + $0x10] sm:$0x1]
    %v86 = vld [vmem:[#allocation2 + $0x14] sm:$0x1]
    %v87 = vld [vmem:[#allocation2 + $0x18] sm:$0x1]
    %v88 = vld [vmem:[#allocation2 + $0x1c] sm:$0x1]
    %v89 = vld [vmem:[#allocation2 + $0x20] sm:$0x1]
    %v90 = vld [vmem:[#allocation2 + $0x24] sm:$0x1]
    %v91 = vld [vmem:[#allocation2 + $0x28] sm:$0x1]
    %v92 = vld [vmem:[#allocation2 + $0x2c] sm:$0x1]
    %v93 = vld [vmem:[#allocation2 + $0x2] sm:$0x1]
    %v94 = vld [vmem:[#allocation2 + $0x6] sm:$0x1]
    %v95 = vld [vmem:[#allocation2 + $0xa] sm:$0x1]
    %v96 = vld [vmem:[#allocation2 + $0xe] sm:$0x1]
    %v97 = vld [vmem:[#allocation2 + $0x12] sm:$0x1]
    %v98 = vld [vmem:[#allocation2 + $0x16] sm:$0x1]
    %v99 = vld [vmem:[#allocation2 + $0x1a] sm:$0x1]
    %v100 = vld [vmem:[#allocation2 + $0x1e] sm:$0x1]
    %v101 = vld [vmem:[#allocation2 + $0x22] sm:$0x1]
    %v102 = vld [vmem:[#allocation2 + $0x26] sm:$0x1]
    %v103 = vld [vmem:[#allocation2 + $0x2a] sm:$0x1]
    %v104 = vld [vmem:[#allocation2 + $0x2e] sm:$0x1]
    %v117 = vrot.slane %v82, 7
    %vm118 = vcmask 1041409
    %v119 = vsel %vm118, %v117, %v81
    %v120 = vrot.slane %v83, 6
    %vm121 = vcmask 1042434
    %v122 = vsel %vm121, %v120, %v119
    %v123 = vrot.slane %v84, 5
    %vm124 = vcmask 1043459
    %v125 = vsel %vm124, %v123, %v122
    %v126 = vrot.slane %v85, 4
    %vm127 = vcmask 1044484
    %v128 = vsel %vm127, %v126, %v125
    %v129 = vrot.slane %v86, 3
    %vm130 = vcmask 1045509
    %v131 = vsel %vm130, %v129, %v128
    %v132 = vrot.slane %v87, 2
    %vm133 = vcmask 1046534
    %v134 = vsel %vm133, %v132, %v131
    %v135 = vrot.slane %v88, 1
    %vm136 = vcmask 1047559
    %v137 = vsel %vm136, %v135, %v134
    %v138 = vrot.slane %v90, 7
    %v139 = vsel %vm118, %v138, %v89
    %v140 = vrot.slane %v91, 6
    %v141 = vsel %vm121, %v140, %v139
    %v142 = vrot.slane %v92, 5
    %v143 = vsel %vm124, %v142, %v141
    %vm146 = vcmask 523264
    %v147 = vsel %vm146, %v137, 0.0
    %148 = vadd.xlane.f32.xlu0 %v147
    %v149 = vpop.xlane.xlu0 %148
    %vm150 = vcmask 519168
    %v151 = vsel %vm150, %v143, 0.0
    %152 = vadd.xlane.f32.xlu0 %v151
    %v153 = vpop.xlane.xlu0 %152
    %v166 = vrot.slane %v94, 7
    %v167 = vsel %vm118, %v166, %v93
    %v168 = vrot.slane %v95, 6
    %v169 = vsel %vm121, %v168, %v167
    %v170 = vrot.slane %v96, 5
    %v171 = vsel %vm124, %v170, %v169
    %v172 = vrot.slane %v97, 4
    %v173 = vsel %vm127, %v172, %v171
    %v174 = vrot.slane %v98, 3
    %v175 = vsel %vm130, %v174, %v173
    %v176 = vrot.slane %v99, 2
    %v177 = vsel %vm133, %v176, %v175
    %v178 = vrot.slane %v100, 1
    %v179 = vsel %vm136, %v178, %v177
    %v180 = vrot.slane %v102, 7
    %v181 = vsel %vm118, %v180, %v101
    %v182 = vrot.slane %v103, 6
    %v183 = vsel %vm121, %v182, %v181
    %v184 = vrot.slane %v104, 5
    %v185 = vsel %vm124, %v184, %v183
    %v188 = vsel %vm146, %v179, 0.0
    %189 = vadd.xlane.f32.xlu0 %v188
    %v190 = vpop.xlane.xlu0 %189
    %v191 = vsel %vm150, %v185, 0.0
    %192 = vadd.xlane.f32.xlu0 %v191
    %v193 = vpop.xlane.xlu0 %192
    %v194 = vadd.f32 %v149, %v190
    %v195 = vadd.f32 %v153, %v193
    %v196 = vmul.f32 %v81, %v81
    %v197 = vmul.f32 %v82, %v82
    %v198 = vmul.f32 %v83, %v83
    %v199 = vmul.f32 %v84, %v84
    %v200 = vmul.f32 %v85, %v85
    %v201 = vmul.f32 %v86, %v86
    %v202 = vmul.f32 %v87, %v87
    %v203 = vmul.f32 %v88, %v88
    %v204 = vmul.f32 %v89, %v89
    %v205 = vmul.f32 %v90, %v90
    %v206 = vmul.f32 %v91, %v91
    %v207 = vmul.f32 %v92, %v92
    %v220 = vrot.slane %v197, 7
    %v221 = vsel %vm118, %v220, %v196
    %v222 = vrot.slane %v198, 6
    %v223 = vsel %vm121, %v222, %v221
    %v224 = vrot.slane %v199, 5
    %v225 = vsel %vm124, %v224, %v223
    %v226 = vrot.slane %v200, 4
    %v227 = vsel %vm127, %v226, %v225
    %v228 = vrot.slane %v201, 3
    %v229 = vsel %vm130, %v228, %v227
    %v230 = vrot.slane %v202, 2
    %v231 = vsel %vm133, %v230, %v229
    %v232 = vrot.slane %v203, 1
    %v233 = vsel %vm136, %v232, %v231
    %v234 = vrot.slane %v205, 7
    %v235 = vsel %vm118, %v234, %v204
    %v236 = vrot.slane %v206, 6
    %v237 = vsel %vm121, %v236, %v235
    %v238 = vrot.slane %v207, 5
    %v239 = vsel %vm124, %v238, %v237
    %v242 = vsel %vm146, %v233, 0.0
    %243 = vadd.xlane.f32.xlu0 %v242
    %v244 = vpop.xlane.xlu0 %243
    %v245 = vsel %vm150, %v239, 0.0
    %246 = vadd.xlane.f32.xlu0 %v245
    %v247 = vpop.xlane.xlu0 %246
    %v248 = vmul.f32 %v93, %v93
    %v249 = vmul.f32 %v94, %v94
    %v250 = vmul.f32 %v95, %v95
    %v251 = vmul.f32 %v96, %v96
    %v252 = vmul.f32 %v97, %v97
    %v253 = vmul.f32 %v98, %v98
    %v254 = vmul.f32 %v99, %v99
    %v255 = vmul.f32 %v100, %v100
    %v256 = vmul.f32 %v101, %v101
    %v257 = vmul.f32 %v102, %v102
    %v258 = vmul.f32 %v103, %v103
    %v259 = vmul.f32 %v104, %v104
    %v272 = vrot.slane %v249, 7
    %v273 = vsel %vm118, %v272, %v248
    %v274 = vrot.slane %v250, 6
    %v275 = vsel %vm121, %v274, %v273
    %v276 = vrot.slane %v251, 5
    %v277 = vsel %vm124, %v276, %v275
    %v278 = vrot.slane %v252, 4
    %v279 = vsel %vm127, %v278, %v277
    %v280 = vrot.slane %v253, 3
    %v281 = vsel %vm130, %v280, %v279
    %v282 = vrot.slane %v254, 2
    %v283 = vsel %vm133, %v282, %v281
    %v284 = vrot.slane %v255, 1
    %v285 = vsel %vm136, %v284, %v283
    %v286 = vrot.slane %v257, 7
    %v287 = vsel %vm118, %v286, %v256
    %v288 = vrot.slane %v258, 6
    %v289 = vsel %vm121, %v288, %v287
    %v290 = vrot.slane %v259, 5
    %v291 = vsel %vm124, %v290, %v289
    %v294 = vsel %vm146, %v285, 0.0
    %295 = vadd.xlane.f32.xlu0 %v294
    %v296 = vpop.xlane.xlu0 %295
    %v297 = vsel %vm150, %v291, 0.0
    %298 = vadd.xlane.f32.xlu0 %v297
    %v299 = vpop.xlane.xlu0 %298
    %v300 = vadd.f32 %v244, %v296
    %v301 = vadd.f32 %v247, %v299
    %v302 = vmul.f32 %v194, 0.0078125
    %v303 = vmul.f32 %v195, 0.0078125
    %v304 = vmul.f32 %v300, 0.0078125
    %v305 = vmul.f32 %v301, 0.0078125
    %v306 = vmul.f32 %v302, %v302
    %v307 = vmul.f32 %v303, %v303
    %v308 = vsub.f32 %v304, %v306
    %v309 = vsub.f32 %v305, %v307
    %v310 = vmax.f32 %v308, 0.0
    %v311 = vmax.f32 %v309, 0.0
    %v312 = vadd.f32 %v310, 1e-05
    %v313 = vadd.f32 %v311, 1e-05
    %v314 = vrsqrt.pop %v312
    %v315 = vrsqrt.pop %v313
    %v316 = vpack.c.bf16 %v81, %v81
    %v317 = vpack.c.bf16 %v82, %v82
    %v318 = vpack.c.bf16 %v83, %v83
    %v319 = vpack.c.bf16 %v84, %v84
    %v320 = vpack.c.bf16 %v85, %v85
    %v321 = vpack.c.bf16 %v86, %v86
    %v322 = vpack.c.bf16 %v87, %v87
    %v323 = vpack.c.bf16 %v88, %v88
    %v324 = vpack.c.bf16 %v89, %v89
    %v325 = vpack.c.bf16 %v90, %v90
    %v326 = vpack.c.bf16 %v91, %v91
    %v327 = vpack.c.bf16 %v92, %v92
    %v328 = vpack.c.bf16 %v93, %v93
    %v329 = vpack.c.bf16 %v94, %v94
    %v330 = vpack.c.bf16 %v95, %v95
    %v331 = vpack.c.bf16 %v96, %v96
    %v332 = vpack.c.bf16 %v97, %v97
    %v333 = vpack.c.bf16 %v98, %v98
    %v334 = vpack.c.bf16 %v99, %v99
    %v335 = vpack.c.bf16 %v100, %v100
    %v336 = vpack.c.bf16 %v101, %v101
    %v337 = vpack.c.bf16 %v102, %v102
    %v338 = vpack.c.bf16 %v103, %v103
    %v339 = vpack.c.bf16 %v104, %v104
    %v352 = vunpack.c.l.b16 %v328
    %v353 = vunpack.c.l.b16 %v329
    %v354 = vunpack.c.l.b16 %v330
    %v355 = vunpack.c.l.b16 %v331
    %v356 = vunpack.c.l.b16 %v332
    %v357 = vunpack.c.l.b16 %v333
    %v358 = vunpack.c.l.b16 %v334
    %v359 = vunpack.c.l.b16 %v335
    %v360 = vunpack.c.l.b16 %v336
    %v361 = vunpack.c.l.b16 %v337
    %v362 = vunpack.c.l.b16 %v338
    %v363 = vunpack.c.l.b16 %v339
    %v364 = vrot.slane %v353, 7
    %v365 = vsel %vm118, %v364, %v352
    %v366 = vrot.slane %v354, 6
    %v367 = vsel %vm121, %v366, %v365
    %v368 = vrot.slane %v355, 5
    %v369 = vsel %vm124, %v368, %v367
    %v370 = vrot.slane %v356, 4
    %v371 = vsel %vm127, %v370, %v369
    %v372 = vrot.slane %v357, 3
    %v373 = vsel %vm130, %v372, %v371
    %v374 = vrot.slane %v358, 2
    %v375 = vsel %vm133, %v374, %v373
    %v376 = vrot.slane %v359, 1
    %v377 = vsel %vm136, %v376, %v375
    %v378 = vrot.slane %v361, 7
    %v379 = vsel %vm118, %v378, %v360
    %v380 = vrot.slane %v362, 6
    %v381 = vsel %vm121, %v380, %v379
    %v382 = vrot.slane %v363, 5
    %v383 = vsel %vm124, %v382, %v381
    %v384 = vpack.c.b16 %v383, %v377
    %v393 = vunpack.c.l.b16 %v71
    %v394 = vunpack.c.l.b16 %v72
    %v395 = vunpack.c.l.b16 %v73
    %v396 = vunpack.c.l.b16 %v74
    %v397 = vunpack.c.l.b16 %v75
    %v398 = vunpack.c.l.b16 %v76
    %v399 = vunpack.c.l.b16 %v77
    %v400 = vunpack.c.l.b16 %v78
    %v401 = vpack.c.b16 %v394, %v393
    %v402 = vpack.c.b16 %v396, %v395
    %v403 = vpack.c.b16 %v398, %v397
    %v404 = vpack.c.b16 %v400, %v399
    %v410 = vsel %vm146, %v384, 0
    %412 = vmatprep.subr.bf16.mxu0 0
    %413 = vmatpush1.bf16.msra.mxu0 %v401
    %414 = vmatprep.subr.bf16.mxu0 0
    %415 = vmatpush1.bf16.msra.mxu0 %v402
    %416 = vmatprep.subr.bf16.mxu0 0
    %417 = vmatpush1.bf16.msra.mxu0 %v403
    %418 = vmatprep.subr.bf16.mxu0 0
    %419 = vmatpush1.bf16.msra.mxu0 %v404
    %420 = vmatprep.subr.bf16.mxu0 0
    %421 = vmatpush1.bf16.msra.mxu0 0
    %422 = vmatprep.subr.bf16.mxu0 0
    %423 = vmatpush1.bf16.msra.mxu0 0
    %424 = vmatprep.subr.bf16.mxu0 0
    %425 = vmatpush1.bf16.msra.mxu0 0
    %426 = vmatprep.subr.bf16.mxu0 0
    %427 = vmatpush1.bf16.msra.mxu0 0
    %428 = vmatprep.subr.bf16.mxu0 0
    %429 = vmatpush1.bf16.msra.mxu0 0
    %430 = vmatprep.subr.bf16.mxu0 0
    %431 = vmatpush1.bf16.msra.mxu0 0
    %432 = vmatprep.subr.bf16.mxu0 0
    %433 = vmatpush1.bf16.msra.mxu0 0
    %434 = vmatprep.subr.bf16.mxu0 0
    %435 = vmatpush1.bf16.msra.mxu0 0
    %436 = vmatprep.subr.bf16.mxu0 0
    %437 = vmatpush1.bf16.msra.mxu0 0
    %438 = vmatprep.subr.bf16.mxu0 0
    %439 = vmatpush1.bf16.msra.mxu0 0
    %440 = vmatprep.subr.bf16.mxu0 0
    %441 = vmatpush1.bf16.msra.mxu0 0
    %442 = vmatprep.subr.bf16.mxu0 0
    %443 = vmatpush1.bf16.msra.mxu0 0
    %444 = vmatprep.mubr.bf16.mxu0 0
    %445 = vmatmul.mubr.bf16.gmra.mrb[0].mxu0 %v410
    %v446 = vpop.f32.mrb[0].mxu0
    %v447 = vadd.f32 0.0, %v446
    %v448 = vpop.f32.mrb[0].mxu0
    %v449 = vpop.f32.mrb[0].mxu0
    %v450 = vadd.f32 0.0, %v449
    %v451 = vpop.f32.mrb[0].mxu0
    %452 = vdwg.mxu0
    %v465 = vunpack.c.l.b16 %v316
    %v466 = vunpack.c.l.b16 %v317
    %v467 = vunpack.c.l.b16 %v318
    %v468 = vunpack.c.l.b16 %v319
    %v469 = vunpack.c.l.b16 %v320
    %v470 = vunpack.c.l.b16 %v321
    %v471 = vunpack.c.l.b16 %v322
    %v472 = vunpack.c.l.b16 %v323
    %v473 = vunpack.c.l.b16 %v324
    %v474 = vunpack.c.l.b16 %v325
    %v475 = vunpack.c.l.b16 %v326
    %v476 = vunpack.c.l.b16 %v327
    %v477 = vrot.slane %v466, 7
    %v478 = vsel %vm118, %v477, %v465
    %v479 = vrot.slane %v467, 6
    %v480 = vsel %vm121, %v479, %v478
    %v481 = vrot.slane %v468, 5
    %v482 = vsel %vm124, %v481, %v480
    %v483 = vrot.slane %v469, 4
    %v484 = vsel %vm127, %v483, %v482
    %v485 = vrot.slane %v470, 3
    %v486 = vsel %vm130, %v485, %v484
    %v487 = vrot.slane %v471, 2
    %v488 = vsel %vm133, %v487, %v486
    %v489 = vrot.slane %v472, 1
    %v490 = vsel %vm136, %v489, %v488
    %v491 = vrot.slane %v474, 7
    %v492 = vsel %vm118, %v491, %v473
    %v493 = vrot.slane %v475, 6
    %v494 = vsel %vm121, %v493, %v492
    %v495 = vrot.slane %v476, 5
    %v496 = vsel %vm124, %v495, %v494
    %v497 = vpack.c.b16 %v496, %v490
    %v506 = vunpack.c.l.b16 %v63
    %v507 = vunpack.c.l.b16 %v64
    %v508 = vunpack.c.l.b16 %v65
    %v509 = vunpack.c.l.b16 %v66
    %v510 = vunpack.c.l.b16 %v67
    %v511 = vunpack.c.l.b16 %v68
    %v512 = vunpack.c.l.b16 %v69
    %v513 = vunpack.c.l.b16 %v70
    %v514 = vpack.c.b16 %v507, %v506
    %v515 = vpack.c.b16 %v509, %v508
    %v516 = vpack.c.b16 %v511, %v510
    %v517 = vpack.c.b16 %v513, %v512
    %v523 = vsel %vm146, %v497, 0
    %525 = vmatprep.subr.bf16.mxu0 0
    %526 = vmatpush1.bf16.msra.mxu0 %v514
    %527 = vmatprep.subr.bf16.mxu0 0
    %528 = vmatpush1.bf16.msra.mxu0 %v515
    %529 = vmatprep.subr.bf16.mxu0 0
    %530 = vmatpush1.bf16.msra.mxu0 %v516
    %531 = vmatprep.subr.bf16.mxu0 0
    %532 = vmatpush1.bf16.msra.mxu0 %v517
    %533 = vmatprep.subr.bf16.mxu0 0
    %534 = vmatpush1.bf16.msra.mxu0 0
    %535 = vmatprep.subr.bf16.mxu0 0
    %536 = vmatpush1.bf16.msra.mxu0 0
    %537 = vmatprep.subr.bf16.mxu0 0
    %538 = vmatpush1.bf16.msra.mxu0 0
    %539 = vmatprep.subr.bf16.mxu0 0
    %540 = vmatpush1.bf16.msra.mxu0 0
    %541 = vmatprep.subr.bf16.mxu0 0
    %542 = vmatpush1.bf16.msra.mxu0 0
    %543 = vmatprep.subr.bf16.mxu0 0
    %544 = vmatpush1.bf16.msra.mxu0 0
    %545 = vmatprep.subr.bf16.mxu0 0
    %546 = vmatpush1.bf16.msra.mxu0 0
    %547 = vmatprep.subr.bf16.mxu0 0
    %548 = vmatpush1.bf16.msra.mxu0 0
    %549 = vmatprep.subr.bf16.mxu0 0
    %550 = vmatpush1.bf16.msra.mxu0 0
    %551 = vmatprep.subr.bf16.mxu0 0
    %552 = vmatpush1.bf16.msra.mxu0 0
    %553 = vmatprep.subr.bf16.mxu0 0
    %554 = vmatpush1.bf16.msra.mxu0 0
    %555 = vmatprep.subr.bf16.mxu0 0
    %556 = vmatpush1.bf16.msra.mxu0 0
    %557 = vmatprep.mubr.bf16.mxu0 0
    %558 = vmatmul.mubr.bf16.gmra.mrb[0].mxu0 %v523
    %v559 = vpop.f32.mrb[0].mxu0
    %v560 = vadd.f32 %v447, %v559
    %v561 = vpop.f32.mrb[0].mxu0
    %v562 = vpop.f32.mrb[0].mxu0
    %v563 = vadd.f32 %v450, %v562
    %v564 = vpop.f32.mrb[0].mxu0
    %565 = vdwg.mxu0
    %v567 = vlaneseq
    %v568 = vshrl.u32 %v567, 7
    %v569 = vsub.s32 0, %v568
    %v570 = vrot.slane %v79, %v569
    %v572 = vmul.f32 %v302, %v570
    %v573 = vmul.f32 %v303, %v570
    %v574 = vsub.f32 %v560, %v572
    %v575 = vsub.f32 %v563, %v573
    %v576 = vmul.f32 %v314, %v574
    %v577 = vmul.f32 %v315, %v575
    %v579 = vlaneseq
    %v580 = vshrl.u32 %v579, 7
    %v581 = vsub.s32 0, %v580
    %v582 = vrot.slane %v80, %v581
    %v584 = vadd.f32 %v576, %v582
    %v585 = vadd.f32 %v577, %v582
    %v588 = vcombine.high %v584, %v584
    %v590 = vunpack.c.l.s4 1966171168
    %v591 = vunpack.c.0.s8 %v590
    %v592 = vlaneseq
    %v593 = vshrl.u32 %v592, 7
    %v594 = vsub.s32 %v591, %v593
    %v595 = vrot.slane %v584, %v594
    %v597 = vunpack.c.l.s4 1966171168
    %v598 = vunpack.c.0.s8 %v597
    %v599 = vlaneseq
    %v600 = vshrl.u32 %v599, 7
    %v601 = vsub.s32 %v598, %v600
    %v602 = vrot.slane %v588, %v601
    %v603 = vcombine.high %v595, %v595
    %v604 = vcombine.high %v602, %v602
    %v606 = vunpack.c.l.s4 1966171168
    %v607 = vunpack.c.0.s8 %v606
    %v608 = vlaneseq
    %v609 = vshrl.u32 %v608, 7
    %v610 = vsub.s32 %v607, %v609
    %v611 = vrot.slane %v595, %v610
    %v613 = vunpack.c.l.s4 1966171168
    %v614 = vunpack.c.0.s8 %v613
    %v615 = vlaneseq
    %v616 = vshrl.u32 %v615, 7
    %v617 = vsub.s32 %v614, %v616
    %v618 = vrot.slane %v602, %v617
    %v620 = vunpack.c.l.s4 1966171168
    %v621 = vunpack.c.0.s8 %v620
    %v622 = vlaneseq
    %v623 = vshrl.u32 %v622, 7
    %v624 = vsub.s32 %v621, %v623
    %v625 = vrot.slane %v603, %v624
    %v627 = vunpack.c.l.s4 1966171168
    %v628 = vunpack.c.0.s8 %v627
    %v629 = vlaneseq
    %v630 = vshrl.u32 %v629, 7
    %v631 = vsub.s32 %v628, %v630
    %v632 = vrot.slane %v604, %v631
    %v633 = vcombine.high %v611, %v611
    %v634 = vcombine.high %v618, %v618
    %v635 = vcombine.high %v625, %v625
    %v636 = vcombine.high %v632, %v632
    %v638 = vunpack.c.l.s4 1966171168
    %v639 = vunpack.c.0.s8 %v638
    %v640 = vlaneseq
    %v641 = vshrl.u32 %v640, 7
    %v642 = vsub.s32 %v639, %v641
    %v643 = vrot.slane %v585, %v642
    %v644 = vcombine.high %v643, %v643
    %v646 = vunpack.c.l.s4 1966171168
    %v647 = vunpack.c.0.s8 %v646
    %v648 = vlaneseq
    %v649 = vshrl.u32 %v648, 7
    %v650 = vsub.s32 %v647, %v649
    %v651 = vrot.slane %v643, %v650
    %v653 = vunpack.c.l.s4 1966171168
    %v654 = vunpack.c.0.s8 %v653
    %v655 = vlaneseq
    %v656 = vshrl.u32 %v655, 7
    %v657 = vsub.s32 %v654, %v656
    %v658 = vrot.slane %v644, %v657
    %v659 = vcombine.high %v651, %v651
    %v660 = vcombine.high %v658, %v658
    %vm673 = vcmask 516096
    %674 = vst.msk [vmem:[#allocation8] sm:$0x1] %vm673, %v611
    %675 = vst.msk [vmem:[#allocation8 + $0x2] sm:$0x1] %vm673, %v625
    %676 = vst.msk [vmem:[#allocation8 + $0x4] sm:$0x1] %vm673, %v633
    %677 = vst.msk [vmem:[#allocation8 + $0x6] sm:$0x1] %vm673, %v635
    %678 = vst.msk [vmem:[#allocation8 + $0x8] sm:$0x1] %vm673, %v618
    %679 = vst.msk [vmem:[#allocation8 + $0xa] sm:$0x1] %vm673, %v632
    %680 = vst.msk [vmem:[#allocation8 + $0xc] sm:$0x1] %vm673, %v634
    %681 = vst.msk [vmem:[#allocation8 + $0xe] sm:$0x1] %vm673, %v636
    %682 = vst.msk [vmem:[#allocation8 + $0x10] sm:$0x1] %vm673, %v651
    %683 = vst.msk [vmem:[#allocation8 + $0x12] sm:$0x1] %vm673, %v658
    %684 = vst.msk [vmem:[#allocation8 + $0x14] sm:$0x1] %vm673, %v659
    %685 = vst.msk [vmem:[#allocation8 + $0x16] sm:$0x1] %vm673, %v660
    %v686 = vld [vmem:[#allocation2 + $0x1] sm:$0x1]
    %v687 = vld [vmem:[#allocation2 + $0x5] sm:$0x1]
    %v688 = vld [vmem:[#allocation2 + $0x9] sm:$0x1]
    %v689 = vld [vmem:[#allocation2 + $0xd] sm:$0x1]
    %v690 = vld [vmem:[#allocation2 + $0x11] sm:$0x1]
    %v691 = vld [vmem:[#allocation2 + $0x15] sm:$0x1]
    %v692 = vld [vmem:[#allocation2 + $0x19] sm:$0x1]
    %v693 = vld [vmem:[#allocation2 + $0x1d] sm:$0x1]
    %v694 = vld [vmem:[#allocation2 + $0x21] sm:$0x1]
    %v695 = vld [vmem:[#allocation2 + $0x25] sm:$0x1]
    %v696 = vld [vmem:[#allocation2 + $0x29] sm:$0x1]
    %v697 = vld [vmem:[#allocation2 + $0x2d] sm:$0x1]
    %v698 = vld [vmem:[#allocation2 + $0x3] sm:$0x1]
    %v699 = vld [vmem:[#allocation2 + $0x7] sm:$0x1]
    %v700 = vld [vmem:[#allocation2 + $0xb] sm:$0x1]
    %v701 = vld [vmem:[#allocation2 + $0xf] sm:$0x1]
    %v702 = vld [vmem:[#allocation2 + $0x13] sm:$0x1]
    %v703 = vld [vmem:[#allocation2 + $0x17] sm:$0x1]
    %v704 = vld [vmem:[#allocation2 + $0x1b] sm:$0x1]
    %v705 = vld [vmem:[#allocation2 + $0x1f] sm:$0x1]
    %v706 = vld [vmem:[#allocation2 + $0x23] sm:$0x1]
    %v707 = vld [vmem:[#allocation2 + $0x27] sm:$0x1]
    %v708 = vld [vmem:[#allocation2 + $0x2b] sm:$0x1]
    %v709 = vld [vmem:[#allocation2 + $0x2f] sm:$0x1]
    %v722 = vrot.slane %v687, 7
    %v723 = vsel %vm118, %v722, %v686
    %v724 = vrot.slane %v688, 6
    %v725 = vsel %vm121, %v724, %v723
    %v726 = vrot.slane %v689, 5
    %v727 = vsel %vm124, %v726, %v725
    %v728 = vrot.slane %v690, 4
    %v729 = vsel %vm127, %v728, %v727
    %v730 = vrot.slane %v691, 3
    %v731 = vsel %vm130, %v730, %v729
    %v732 = vrot.slane %v692, 2
    %v733 = vsel %vm133, %v732, %v731
    %v734 = vrot.slane %v693, 1
    %v735 = vsel %vm136, %v734, %v733
    %v736 = vrot.slane %v695, 7
    %v737 = vsel %vm118, %v736, %v694
    %v738 = vrot.slane %v696, 6
    %v739 = vsel %vm121, %v738, %v737
    %v740 = vrot.slane %v697, 5
    %v741 = vsel %vm124, %v740, %v739
    %v744 = vsel %vm146, %v735, 0.0
    %745 = vadd.xlane.f32.xlu0 %v744
    %v746 = vpop.xlane.xlu0 %745
    %v747 = vsel %vm150, %v741, 0.0
    %748 = vadd.xlane.f32.xlu0 %v747
    %v749 = vpop.xlane.xlu0 %748
    %v762 = vrot.slane %v699, 7
    %v763 = vsel %vm118, %v762, %v698
    %v764 = vrot.slane %v700, 6
    %v765 = vsel %vm121, %v764, %v763
    %v766 = vrot.slane %v701, 5
    %v767 = vsel %vm124, %v766, %v765
    %v768 = vrot.slane %v702, 4
    %v769 = vsel %vm127, %v768, %v767
    %v770 = vrot.slane %v703, 3
    %v771 = vsel %vm130, %v770, %v769
    %v772 = vrot.slane %v704, 2
    %v773 = vsel %vm133, %v772, %v771
    %v774 = vrot.slane %v705, 1
    %v775 = vsel %vm136, %v774, %v773
    %v776 = vrot.slane %v707, 7
    %v777 = vsel %vm118, %v776, %v706
    %v778 = vrot.slane %v708, 6
    %v779 = vsel %vm121, %v778, %v777
    %v780 = vrot.slane %v709, 5
    %v781 = vsel %vm124, %v780, %v779
    %v784 = vsel %vm146, %v775, 0.0
    %785 = vadd.xlane.f32.xlu0 %v784
    %v786 = vpop.xlane.xlu0 %785
    %v787 = vsel %vm150, %v781, 0.0
    %788 = vadd.xlane.f32.xlu0 %v787
    %v789 = vpop.xlane.xlu0 %788
    %v790 = vadd.f32 %v746, %v786
    %v791 = vadd.f32 %v749, %v789
    %v792 = vmul.f32 %v686, %v686
    %v793 = vmul.f32 %v687, %v687
    %v794 = vmul.f32 %v688, %v688
    %v795 = vmul.f32 %v689, %v689
    %v796 = vmul.f32 %v690, %v690
    %v797 = vmul.f32 %v691, %v691
    %v798 = vmul.f32 %v692, %v692
    %v799 = vmul.f32 %v693, %v693
    %v800 = vmul.f32 %v694, %v694
    %v801 = vmul.f32 %v695, %v695
    %v802 = vmul.f32 %v696, %v696
    %v803 = vmul.f32 %v697, %v697
    %v816 = vrot.slane %v793, 7
    %v817 = vsel %vm118, %v816, %v792
    %v818 = vrot.slane %v794, 6
    %v819 = vsel %vm121, %v818, %v817
    %v820 = vrot.slane %v795, 5
    %v821 = vsel %vm124, %v820, %v819
    %v822 = vrot.slane %v796, 4
    %v823 = vsel %vm127, %v822, %v821
    %v824 = vrot.slane %v797, 3
    %v825 = vsel %vm130, %v824, %v823
    %v826 = vrot.slane %v798, 2
    %v827 = vsel %vm133, %v826, %v825
    %v828 = vrot.slane %v799, 1
    %v829 = vsel %vm136, %v828, %v827
    %v830 = vrot.slane %v801, 7
    %v831 = vsel %vm118, %v830, %v800
    %v832 = vrot.slane %v802, 6
    %v833 = vsel %vm121, %v832, %v831
    %v834 = vrot.slane %v803, 5
    %v835 = vsel %vm124, %v834, %v833
    %v838 = vsel %vm146, %v829, 0.0
    %839 = vadd.xlane.f32.xlu0 %v838
    %v840 = vpop.xlane.xlu0 %839
    %v841 = vsel %vm150, %v835, 0.0
    %842 = vadd.xlane.f32.xlu0 %v841
    %v843 = vpop.xlane.xlu0 %842
    %v844 = vmul.f32 %v698, %v698
    %v845 = vmul.f32 %v699, %v699
    %v846 = vmul.f32 %v700, %v700
    %v847 = vmul.f32 %v701, %v701
    %v848 = vmul.f32 %v702, %v702
    %v849 = vmul.f32 %v703, %v703
    %v850 = vmul.f32 %v704, %v704
    %v851 = vmul.f32 %v705, %v705
    %v852 = vmul.f32 %v706, %v706
    %v853 = vmul.f32 %v707, %v707
    %v854 = vmul.f32 %v708, %v708
    %v855 = vmul.f32 %v709, %v709
    %v868 = vrot.slane %v845, 7
    %v869 = vsel %vm118, %v868, %v844
    %v870 = vrot.slane %v846, 6
    %v871 = vsel %vm121, %v870, %v869
    %v872 = vrot.slane %v847, 5
    %v873 = vsel %vm124, %v872, %v871
    %v874 = vrot.slane %v848, 4
    %v875 = vsel %vm127, %v874, %v873
    %v876 = vrot.slane %v849, 3
    %v877 = vsel %vm130, %v876, %v875
    %v878 = vrot.slane %v850, 2
    %v879 = vsel %vm133, %v878, %v877
    %v880 = vrot.slane %v851, 1
    %v881 = vsel %vm136, %v880, %v879
    %v882 = vrot.slane %v853, 7
    %v883 = vsel %vm118, %v882, %v852
    %v884 = vrot.slane %v854, 6
    %v885 = vsel %vm121, %v884, %v883
    %v886 = vrot.slane %v855, 5
    %v887 = vsel %vm124, %v886, %v885
    %v890 = vsel %vm146, %v881, 0.0
    %891 = vadd.xlane.f32.xlu0 %v890
    %v892 = vpop.xlane.xlu0 %891
    %v893 = vsel %vm150, %v887, 0.0
    %894 = vadd.xlane.f32.xlu0 %v893
    %v895 = vpop.xlane.xlu0 %894
    %v896 = vadd.f32 %v840, %v892
    %v897 = vadd.f32 %v843, %v895
    %v898 = vmul.f32 %v790, 0.0078125
    %v899 = vmul.f32 %v791, 0.0078125
    %v900 = vmul.f32 %v896, 0.0078125
    %v901 = vmul.f32 %v897, 0.0078125
    %v902 = vmul.f32 %v898, %v898
    %v903 = vmul.f32 %v899, %v899
    %v904 = vsub.f32 %v900, %v902
    %v905 = vsub.f32 %v901, %v903
    %v906 = vmax.f32 %v904, 0.0
    %v907 = vmax.f32 %v905, 0.0
    %v908 = vadd.f32 %v906, 1e-05
    %v909 = vadd.f32 %v907, 1e-05
    %v910 = vrsqrt.pop %v908
    %v911 = vrsqrt.pop %v909
    %v912 = vpack.c.bf16 %v686, %v686
    %v913 = vpack.c.bf16 %v687, %v687
    %v914 = vpack.c.bf16 %v688, %v688
    %v915 = vpack.c.bf16 %v689, %v689
    %v916 = vpack.c.bf16 %v690, %v690
    %v917 = vpack.c.bf16 %v691, %v691
    %v918 = vpack.c.bf16 %v692, %v692
    %v919 = vpack.c.bf16 %v693, %v693
    %v920 = vpack.c.bf16 %v694, %v694
    %v921 = vpack.c.bf16 %v695, %v695
    %v922 = vpack.c.bf16 %v696, %v696
    %v923 = vpack.c.bf16 %v697, %v697
    %v924 = vpack.c.bf16 %v698, %v698
    %v925 = vpack.c.bf16 %v699, %v699
    %v926 = vpack.c.bf16 %v700, %v700
    %v927 = vpack.c.bf16 %v701, %v701
    %v928 = vpack.c.bf16 %v702, %v702
    %v929 = vpack.c.bf16 %v703, %v703
    %v930 = vpack.c.bf16 %v704, %v704
    %v931 = vpack.c.bf16 %v705, %v705
    %v932 = vpack.c.bf16 %v706, %v706
    %v933 = vpack.c.bf16 %v707, %v707
    %v934 = vpack.c.bf16 %v708, %v708
    %v935 = vpack.c.bf16 %v709, %v709
    %v948 = vunpack.c.l.b16 %v924
    %v949 = vunpack.c.l.b16 %v925
    %v950 = vunpack.c.l.b16 %v926
    %v951 = vunpack.c.l.b16 %v927
    %v952 = vunpack.c.l.b16 %v928
    %v953 = vunpack.c.l.b16 %v929
    %v954 = vunpack.c.l.b16 %v930
    %v955 = vunpack.c.l.b16 %v931
    %v956 = vunpack.c.l.b16 %v932
    %v957 = vunpack.c.l.b16 %v933
    %v958 = vunpack.c.l.b16 %v934
    %v959 = vunpack.c.l.b16 %v935
    %v960 = vrot.slane %v949, 7
    %v961 = vsel %vm118, %v960, %v948
    %v962 = vrot.slane %v950, 6
    %v963 = vsel %vm121, %v962, %v961
    %v964 = vrot.slane %v951, 5
    %v965 = vsel %vm124, %v964, %v963
    %v966 = vrot.slane %v952, 4
    %v967 = vsel %vm127, %v966, %v965
    %v968 = vrot.slane %v953, 3
    %v969 = vsel %vm130, %v968, %v967
    %v970 = vrot.slane %v954, 2
    %v971 = vsel %vm133, %v970, %v969
    %v972 = vrot.slane %v955, 1
    %v973 = vsel %vm136, %v972, %v971
    %v974 = vrot.slane %v957, 7
    %v975 = vsel %vm118, %v974, %v956
    %v976 = vrot.slane %v958, 6
    %v977 = vsel %vm121, %v976, %v975
    %v978 = vrot.slane %v959, 5
    %v979 = vsel %vm124, %v978, %v977
    %v980 = vpack.c.b16 %v979, %v973
    %v982 = vsel %vm146, %v980, 0
    %984 = vmatprep.subr.bf16.mxu0 0
    %985 = vmatpush1.bf16.msra.mxu0 %v401
    %986 = vmatprep.subr.bf16.mxu0 0
    %987 = vmatpush1.bf16.msra.mxu0 %v402
    %988 = vmatprep.subr.bf16.mxu0 0
    %989 = vmatpush1.bf16.msra.mxu0 %v403
    %990 = vmatprep.subr.bf16.mxu0 0
    %991 = vmatpush1.bf16.msra.mxu0 %v404
    %992 = vmatprep.subr.bf16.mxu0 0
    %993 = vmatpush1.bf16.msra.mxu0 0
    %994 = vmatprep.subr.bf16.mxu0 0
    %995 = vmatpush1.bf16.msra.mxu0 0
    %996 = vmatprep.subr.bf16.mxu0 0
    %997 = vmatpush1.bf16.msra.mxu0 0
    %998 = vmatprep.subr.bf16.mxu0 0
    %999 = vmatpush1.bf16.msra.mxu0 0
    %1000 = vmatprep.subr.bf16.mxu0 0
    %1001 = vmatpush1.bf16.msra.mxu0 0
    %1002 = vmatprep.subr.bf16.mxu0 0
    %1003 = vmatpush1.bf16.msra.mxu0 0
    %1004 = vmatprep.subr.bf16.mxu0 0
    %1005 = vmatpush1.bf16.msra.mxu0 0
    %1006 = vmatprep.subr.bf16.mxu0 0
    %1007 = vmatpush1.bf16.msra.mxu0 0
    %1008 = vmatprep.subr.bf16.mxu0 0
    %1009 = vmatpush1.bf16.msra.mxu0 0
    %1010 = vmatprep.subr.bf16.mxu0 0
    %1011 = vmatpush1.bf16.msra.mxu0 0
    %1012 = vmatprep.subr.bf16.mxu0 0
    %1013 = vmatpush1.bf16.msra.mxu0 0
    %1014 = vmatprep.subr.bf16.mxu0 0
    %1015 = vmatpush1.bf16.msra.mxu0 0
    %1016 = vmatprep.mubr.bf16.mxu0 0
    %1017 = vmatmul.mubr.bf16.gmra.mrb[0].mxu0 %v982
    %v1018 = vpop.f32.mrb[0].mxu0
    %v1019 = vadd.f32 0.0, %v1018
    %v1020 = vpop.f32.mrb[0].mxu0
    %v1021 = vpop.f32.mrb[0].mxu0
    %v1022 = vadd.f32 0.0, %v1021
    %v1023 = vpop.f32.mrb[0].mxu0
    %1024 = vdwg.mxu0
    %v1037 = vunpack.c.l.b16 %v912
    %v1038 = vunpack.c.l.b16 %v913
    %v1039 = vunpack.c.l.b16 %v914
    %v1040 = vunpack.c.l.b16 %v915
    %v1041 = vunpack.c.l.b16 %v916
    %v1042 = vunpack.c.l.b16 %v917
    %v1043 = vunpack.c.l.b16 %v918
    %v1044 = vunpack.c.l.b16 %v919
    %v1045 = vunpack.c.l.b16 %v920
    %v1046 = vunpack.c.l.b16 %v921
    %v1047 = vunpack.c.l.b16 %v922
    %v1048 = vunpack.c.l.b16 %v923
    %v1049 = vrot.slane %v1038, 7
    %v1050 = vsel %vm118, %v1049, %v1037
    %v1051 = vrot.slane %v1039, 6
    %v1052 = vsel %vm121, %v1051, %v1050
    %v1053 = vrot.slane %v1040, 5
    %v1054 = vsel %vm124, %v1053, %v1052
    %v1055 = vrot.slane %v1041, 4
    %v1056 = vsel %vm127, %v1055, %v1054
    %v1057 = vrot.slane %v1042, 3
    %v1058 = vsel %vm130, %v1057, %v1056
    %v1059 = vrot.slane %v1043, 2
    %v1060 = vsel %vm133, %v1059, %v1058
    %v1061 = vrot.slane %v1044, 1
    %v1062 = vsel %vm136, %v1061, %v1060
    %v1063 = vrot.slane %v1046, 7
    %v1064 = vsel %vm118, %v1063, %v1045
    %v1065 = vrot.slane %v1047, 6
    %v1066 = vsel %vm121, %v1065, %v1064
    %v1067 = vrot.slane %v1048, 5
    %v1068 = vsel %vm124, %v1067, %v1066
    %v1069 = vpack.c.b16 %v1068, %v1062
    %v1071 = vsel %vm146, %v1069, 0
    %1073 = vmatprep.subr.bf16.mxu0 0
    %1074 = vmatpush1.bf16.msra.mxu0 %v514
    %1075 = vmatprep.subr.bf16.mxu0 0
    %1076 = vmatpush1.bf16.msra.mxu0 %v515
    %1077 = vmatprep.subr.bf16.mxu0 0
    %1078 = vmatpush1.bf16.msra.mxu0 %v516
    %1079 = vmatprep.subr.bf16.mxu0 0
    %1080 = vmatpush1.bf16.msra.mxu0 %v517
    %1081 = vmatprep.subr.bf16.mxu0 0
    %1082 = vmatpush1.bf16.msra.mxu0 0
    %1083 = vmatprep.subr.bf16.mxu0 0
    %1084 = vmatpush1.bf16.msra.mxu0 0
    %1085 = vmatprep.subr.bf16.mxu0 0
    %1086 = vmatpush1.bf16.msra.mxu0 0
    %1087 = vmatprep.subr.bf16.mxu0 0
    %1088 = vmatpush1.bf16.msra.mxu0 0
    %1089 = vmatprep.subr.bf16.mxu0 0
    %1090 = vmatpush1.bf16.msra.mxu0 0
    %1091 = vmatprep.subr.bf16.mxu0 0
    %1092 = vmatpush1.bf16.msra.mxu0 0
    %1093 = vmatprep.subr.bf16.mxu0 0
    %1094 = vmatpush1.bf16.msra.mxu0 0
    %1095 = vmatprep.subr.bf16.mxu0 0
    %1096 = vmatpush1.bf16.msra.mxu0 0
    %1097 = vmatprep.subr.bf16.mxu0 0
    %1098 = vmatpush1.bf16.msra.mxu0 0
    %1099 = vmatprep.subr.bf16.mxu0 0
    %1100 = vmatpush1.bf16.msra.mxu0 0
    %1101 = vmatprep.subr.bf16.mxu0 0
    %1102 = vmatpush1.bf16.msra.mxu0 0
    %1103 = vmatprep.subr.bf16.mxu0 0
    %1104 = vmatpush1.bf16.msra.mxu0 0
    %1105 = vmatprep.mubr.bf16.mxu0 0
    %1106 = vmatmul.mubr.bf16.gmra.mrb[0].mxu0 %v1071
    %v1107 = vpop.f32.mrb[0].mxu0
    %v1108 = vadd.f32 %v1019, %v1107
    %v1109 = vpop.f32.mrb[0].mxu0
    %v1110 = vpop.f32.mrb[0].mxu0
    %v1111 = vadd.f32 %v1022, %v1110
    %v1112 = vpop.f32.mrb[0].mxu0
    %1113 = vdwg.mxu0
    %v1114 = vmul.f32 %v898, %v570
    %v1115 = vmul.f32 %v899, %v570
    %v1116 = vsub.f32 %v1108, %v1114
    %v1117 = vsub.f32 %v1111, %v1115
    %v1118 = vmul.f32 %v910, %v1116
    %v1119 = vmul.f32 %v911, %v1117
    %v1120 = vadd.f32 %v1118, %v582
    %v1121 = vadd.f32 %v1119, %v582
    %v1124 = vcombine.high %v1120, %v1120
    %v1126 = vunpack.c.l.s4 1966171168
    %v1127 = vunpack.c.0.s8 %v1126
    %v1128 = vlaneseq
    %v1129 = vshrl.u32 %v1128, 7
    %v1130 = vsub.s32 %v1127, %v1129
    %v1131 = vrot.slane %v1120, %v1130
    %v1133 = vunpack.c.l.s4 1966171168
    %v1134 = vunpack.c.0.s8 %v1133
    %v1135 = vlaneseq
    %v1136 = vshrl.u32 %v1135, 7
    %v1137 = vsub.s32 %v1134, %v1136
    %v1138 = vrot.slane %v1124, %v1137
    %v1139 = vcombine.high %v1131, %v1131
    %v1140 = vcombine.high %v1138, %v1138
    %v1142 = vunpack.c.l.s4 1966171168
    %v1143 = vunpack.c.0.s8 %v1142
    %v1144 = vlaneseq
    %v1145 = vshrl.u32 %v1144, 7
    %v1146 = vsub.s32 %v1143, %v1145
    %v1147 = vrot.slane %v1131, %v1146
    %v1149 = vunpack.c.l.s4 1966171168
    %v1150 = vunpack.c.0.s8 %v1149
    %v1151 = vlaneseq
    %v1152 = vshrl.u32 %v1151, 7
    %v1153 = vsub.s32 %v1150, %v1152
    %v1154 = vrot.slane %v1138, %v1153
    %v1156 = vunpack.c.l.s4 1966171168
    %v1157 = vunpack.c.0.s8 %v1156
    %v1158 = vlaneseq
    %v1159 = vshrl.u32 %v1158, 7
    %v1160 = vsub.s32 %v1157, %v1159
    %v1161 = vrot.slane %v1139, %v1160
    %v1163 = vunpack.c.l.s4 1966171168
    %v1164 = vunpack.c.0.s8 %v1163
    %v1165 = vlaneseq
    %v1166 = vshrl.u32 %v1165, 7
    %v1167 = vsub.s32 %v1164, %v1166
    %v1168 = vrot.slane %v1140, %v1167
    %v1169 = vcombine.high %v1147, %v1147
    %v1170 = vcombine.high %v1154, %v1154
    %v1171 = vcombine.high %v1161, %v1161
    %v1172 = vcombine.high %v1168, %v1168
    %v1174 = vunpack.c.l.s4 1966171168
    %v1175 = vunpack.c.0.s8 %v1174
    %v1176 = vlaneseq
    %v1177 = vshrl.u32 %v1176, 7
    %v1178 = vsub.s32 %v1175, %v1177
    %v1179 = vrot.slane %v1121, %v1178
    %v1180 = vcombine.high %v1179, %v1179
    %v1182 = vunpack.c.l.s4 1966171168
    %v1183 = vunpack.c.0.s8 %v1182
    %v1184 = vlaneseq
    %v1185 = vshrl.u32 %v1184, 7
    %v1186 = vsub.s32 %v1183, %v1185
    %v1187 = vrot.slane %v1179, %v1186
    %v1189 = vunpack.c.l.s4 1966171168
    %v1190 = vunpack.c.0.s8 %v1189
    %v1191 = vlaneseq
    %v1192 = vshrl.u32 %v1191, 7
    %v1193 = vsub.s32 %v1190, %v1192
    %v1194 = vrot.slane %v1180, %v1193
    %v1195 = vcombine.high %v1187, %v1187
    %v1196 = vcombine.high %v1194, %v1194
    %1209 = vst.msk [vmem:[#allocation8 + $0x1] sm:$0x1] %vm673, %v1147
    %1210 = vst.msk [vmem:[#allocation8 + $0x3] sm:$0x1] %vm673, %v1161
    %1211 = vst.msk [vmem:[#allocation8 + $0x5] sm:$0x1] %vm673, %v1169
    %1212 = vst.msk [vmem:[#allocation8 + $0x7] sm:$0x1] %vm673, %v1171
    %1213 = vst.msk [vmem:[#allocation8 + $0x9] sm:$0x1] %vm673, %v1154
    %1214 = vst.msk [vmem:[#allocation8 + $0xb] sm:$0x1] %vm673, %v1168
    %1215 = vst.msk [vmem:[#allocation8 + $0xd] sm:$0x1] %vm673, %v1170
    %1216 = vst.msk [vmem:[#allocation8 + $0xf] sm:$0x1] %vm673, %v1172
    %1217 = vst.msk [vmem:[#allocation8 + $0x11] sm:$0x1] %vm673, %v1187
    %1218 = vst.msk [vmem:[#allocation8 + $0x13] sm:$0x1] %vm673, %v1194
    %1219 = vst.msk [vmem:[#allocation8 + $0x15] sm:$0x1] %vm673, %v1195
    %1220 = vst.msk [vmem:[#allocation8 + $0x17] sm:$0x1] %vm673, %v1196
    // Predicated region
    $region34: #{tpu_custom_call.1} parent=1 // pred_check
      _
    $region35: #{tpu_custom_call.1} parent=1 // pred_check_branch
      %1222 = sbr.rel (0) target = $region37
    $region36: #{tpu_custom_call.1} parent=1 // pred_region
      %s1224 = ssub.s32 384, 384
      %1225 = vsyncadd [#allocation4], %s1224
      %s1226 = sshll.u32 [#allocation8], 4
      %s1227 = int_to_ptr.vmem [resolvable:$true] %s1226
      %1232 = dma.vmem_to_hbm [thread:$0]  %s1227, 384, %s5, [#allocation4], 32, 32, 2
    $region37: #{tpu_custom_call.1} parent=1 // pred_fallthru
      _
    // Predicated region
    $region38: #{tpu_custom_call.1} parent=1 // pred_check
      _
    $region39: #{tpu_custom_call.1} parent=1 // pred_check_branch
      %1234 = sbr.rel (0) target = $region41
    $region40: #{tpu_custom_call.1} parent=1 // pred_region
      %1235 = dma.done [#allocation4], 384
    $region41: #{tpu_custom_call.1} parent=1 // pred_fallthru
      _
    %1236 = vsyncpa [#allocation3], 1
    %1237 = vsyncpa [#allocation6], 1
    %1238 = vsyncpa [#allocation4], 1

</llo_original>
